<compile_context>
chip_gen: v7x
topology: tpu7x:2x2x1
jax: 0.10.0
libtpu: 0.0.40
codegen_flags: <defaults>
</compile_context>

<pallas_src>
import functools

import jax
import jax.numpy as jnp
from jax.experimental import pallas as pl
from jax.experimental.pallas import tpu as pltpu


def _round_up(x, m):
    return ((x + m - 1) // m) * m


def _largest_divisor(n, cap, multiple=1):
    """Largest d <= cap with d % multiple == 0 and n % d == 0.
    Falls back to `multiple` (assumed to divide n)."""
    best = multiple
    for d in range(multiple, min(n, max(cap, multiple)) + 1, multiple):
        if n % d == 0:
            best = d
    return best


def _detect_vmem_limit():
    """Generation-aware scoped-VMEM limit: ~96-100 MiB on v5e/v6e (128 MiB
    physical), ~48 MiB on v7x (64 MiB physical)."""
    cap = None
    try:
        cap = getattr(pltpu.get_tpu_info(), "vmem_capacity_bytes", None)
    except Exception:
        cap = None
    if not cap:
        cap = 64 * 1024 * 1024          # conservative (v7x-sized) fallback
    return int(max(16 * 1024 * 1024, min(cap * 3 // 4, 100 * 1024 * 1024)))


_VMEM_LIMIT = _detect_vmem_limit()


def _pick_recurrence_tiling(T, Bp, Hp, vmem_limit, max_unroll=32):
    """Batch tile (divisor of Bp, multiple of 8) and time chunk (divisor of T)
    sized against the VMEM budget; the chunk also bounds the static unroll."""
    bt = _largest_divisor(Bp, cap=min(Bp, 256), multiple=8)
    budget = vmem_limit // 2
    fixed = (Hp * Hp * 2) * 2            # W_hh^T bf16, double buffered
    fixed += (bt * Hp * 4) * 2 * 2       # h0 in + hT out, f32, double buffered
    fixed += bt * Hp * 4                 # f32 carry scratch
    per_t = bt * Hp * (4 + 2) * 2        # xw in (f32) + h out (bf16), dbl buf
    max_chunk = max(1, min(max_unroll, (budget - fixed) // per_t))
    t_chunk = _largest_divisor(T, cap=int(max_chunk), multiple=1)
    return bt, t_chunk


# ---------------------------------------------------------------------------
# Pallas kernels
# ---------------------------------------------------------------------------
def _matmul_bias_kernel(x_ref, w_ref, b_ref, o_ref):
    """o = x @ W + b on one (tm, tn) output tile.  x is cast to the weight
    dtype (bf16) so the MXU runs in bf16; accumulation is f32."""
    x = x_ref[...].astype(w_ref.dtype)
    o_ref[...] = (
        jnp.dot(x, w_ref[...], preferred_element_type=jnp.float32)
        + b_ref[...]
    ).astype(o_ref.dtype)


def _rnn_recurrence_kernel(xw_ref, whh_ref, h0_ref, out_ref, hT_ref,
                           h_scratch, *, t_chunk):
    """Vanilla-RNN recurrence over one (batch-tile, time-chunk) block.

    Time-major blocks: xw_ref/out_ref are (t_chunk, bt, Hp) so each step loads
    and stores one contiguous (bt, Hp) slab.  xw already contains
    x_t @ W_ih^T + b_ih + b_hh, so each step is h = tanh(xw_t + h @ W_hh^T).
    Grid = (batch tiles [parallel], time chunks [arbitrary / serial]).
    """
    c = pl.program_id(1)

    @pl.when(c == 0)
    def _():
        h_scratch[...] = h0_ref[...]

    w_hh = whh_ref[...]                      # (Hp, Hp) bf16, chunk-resident
    h = h_scratch[...]                       # (bt, Hp) f32 carry
    for t in range(t_chunk):                 # static unroll, bounded by budget
        h = jnp.tanh(
            xw_ref[t]
            + jnp.dot(h.astype(w_hh.dtype), w_hh,
                      preferred_element_type=jnp.float32))
        out_ref[t] = h.astype(out_ref.dtype)
    h_scratch[...] = h
    hT_ref[...] = h                          # resident block; final writeback


# ---------------------------------------------------------------------------
# Wrappers
# ---------------------------------------------------------------------------
def matmul_bias(x, w_t, b, out_dtype=jnp.float32, tm=256, tn=512, n_major=None):
    """Tiled (M,K)x(K,N)+bias matmul.  K kept whole (<= ~2k for this model).
    n_major=True puts the N axis outermost so the weight is streamed from HBM
    only once (use for the vocab FC); n_major=False keeps M outermost (use
    when the activation dominates traffic)."""
    M, K = x.shape
    _, N = w_t.shape

    if n_major is None:
        n_major = (K * N * jnp.dtype(w_t.dtype).itemsize
                   > M * K * jnp.dtype(x.dtype).itemsize)

    if M <= tm:
        tm_eff = _round_up(M, 8)
        Mp = tm_eff
    else:
        tm_eff = tm
        Mp = _round_up(M, tm)
    if N <= tn:
        tn_eff = _round_up(N, 128)           # lane-dense output (>= 128)
        Np = tn_eff
    else:
        tn_eff = tn
        Np = _round_up(N, tn)

    x_p = jnp.pad(x, ((0, Mp - M), (0, 0))) if Mp != M else x
    w_p = jnp.pad(w_t, ((0, 0), (0, Np - N))) if Np != N else w_t
    b_p = jnp.pad(b, ((0, 0), (0, Np - N))) if Np != N else b

    if n_major:                               # weight tile constant on fast axis
        grid = (Np // tn_eff, Mp // tm_eff)
        x_map = lambda j, i: (i, 0)
        w_map = lambda j, i: (0, j)
        b_map = lambda j, i: (0, j)
        o_map = lambda j, i: (i, j)
    else:
        grid = (Mp // tm_eff, Np // tn_eff)
        x_map = lambda i, j: (i, 0)
        w_map = lambda i, j: (0, j)
        b_map = lambda i, j: (0, j)
        o_map = lambda i, j: (i, j)

    out = pl.pallas_call(
        _matmul_bias_kernel,
        out_shape=jax.ShapeDtypeStruct((Mp, Np), out_dtype),
        grid_spec=pltpu.PrefetchScalarGridSpec(
            num_scalar_prefetch=0,
            grid=grid,
            in_specs=[
                pl.BlockSpec((tm_eff, K), x_map),     # activation tile
                pl.BlockSpec((K, tn_eff), w_map),     # weight tile
                pl.BlockSpec((1, tn_eff), b_map),     # bias tile
            ],
            out_specs=pl.BlockSpec((tm_eff, tn_eff), o_map),
        ),
        compiler_params=pltpu.CompilerParams(
            dimension_semantics=("parallel", "parallel"),
            vmem_limit_bytes=_VMEM_LIMIT),
    )(x_p, w_p, b_p)
    if Mp != M or Np != N:
        out = out[:M, :N]
    return out


def rnn_recurrence(xw_tbh, w_hh_t, h0, t_chunk, bt, out_dtype=jnp.bfloat16):
    """xw_tbh: (T, Bp, Hp) f32 time-major precomputed projection (+bias).
    Returns ((T, Bp, Hp) bf16 hidden sequence, (Bp, Hp) f32 final hidden)."""
    T, B, H = xw_tbh.shape
    n_chunks = T // t_chunk
    nb = B // bt
    kernel = functools.partial(_rnn_recurrence_kernel, t_chunk=t_chunk)
    out, hT = pl.pallas_call(
        kernel,
        out_shape=(
            jax.ShapeDtypeStruct((T, B, H), out_dtype),
            jax.ShapeDtypeStruct((B, H), jnp.float32),
        ),
        grid_spec=pltpu.PrefetchScalarGridSpec(
            num_scalar_prefetch=0,
            grid=(nb, n_chunks),
            in_specs=[
                pl.BlockSpec((t_chunk, bt, H), lambda b, c: (c, b, 0)),  # xw
                pl.BlockSpec((H, H), lambda b, c: (0, 0)),               # W_hh^T
                pl.BlockSpec((bt, H), lambda b, c: (b, 0)),              # h0
            ],
            out_specs=(
                pl.BlockSpec((t_chunk, bt, H), lambda b, c: (c, b, 0)),  # h seq
                pl.BlockSpec((bt, H), lambda b, c: (b, 0)),              # final h
            ),
            scratch_shapes=[pltpu.VMEM((bt, H), jnp.float32)],
        ),
        compiler_params=pltpu.CompilerParams(
            dimension_semantics=("parallel", "arbitrary"),
            vmem_limit_bytes=_VMEM_LIMIT),
    )(xw_tbh, w_hh_t, h0)
    return out, hT


def vanilla_rnn_forward(params, input_ids, hidden=None):
    """Forward pass matching VanillaRNNModel.forward in eval mode.

    input_ids: (B, T) int32
    returns (logits (B, T, V) float32, hidden (num_layers, B, H) float32)
    """
    B, T = input_ids.shape
    emb_table = params["embedding"]                     # (V, E) bf16
    num_layers = len(params["rnn"])
    H = params["rnn"][0]["w_hh_t"].shape[0]
    V = params["fc_w_t"].shape[1]

    Bp = _round_up(B, 8)          # sublane pad
    Hp = _round_up(H, 128)        # lane-dense hidden dim (zero pad is exact)

    ids = input_ids
    if Bp != B:
        ids = jnp.pad(ids, ((0, Bp - B), (0, 0)))
    if hidden is None:
        hidden_p = jnp.zeros((num_layers, Bp, Hp), jnp.float32)
    else:
        hidden_p = jnp.pad(hidden.astype(jnp.float32),
                           ((0, 0), (0, Bp - B), (0, Hp - H)))

    bt, t_chunk = _pick_recurrence_tiling(T, Bp, Hp, _VMEM_LIMIT)

    # Time-major embedding gather (plain JAX glue): (T, Bp, E) bf16.
    x = jnp.take(emb_table, ids.T, axis=0)

    h_finals = []
    for l in range(num_layers):
        p = params["rnn"][l]
        in_dim = p["w_ih_t"].shape[0]

        # Zero-pad weights to the lane-dense hidden dim Hp (numerically exact).
        w_ih_t = p["w_ih_t"]
        if l > 0 and in_dim != Hp:                      # input is padded (.., Hp)
            w_ih_t = jnp.pad(w_ih_t, ((0, Hp - in_dim), (0, 0)))
        if w_ih_t.shape[1] != Hp:
            w_ih_t = jnp.pad(w_ih_t, ((0, 0), (0, Hp - w_ih_t.shape[1])))
        bias = p["bias"]
        if bias.shape[1] != Hp:
            bias = jnp.pad(bias, ((0, 0), (0, Hp - bias.shape[1])))
        w_hh_t = p["w_hh_t"]
        if w_hh_t.shape[0] != Hp:
            w_hh_t = jnp.pad(w_hh_t, ((0, Hp - w_hh_t.shape[0]),
                                      (0, Hp - w_hh_t.shape[1])))

        # Hoisted input projection: one big MXU matmul for all T steps.
        xw = matmul_bias(x.reshape(T * Bp, x.shape[-1]), w_ih_t, bias,
                         out_dtype=jnp.float32, n_major=False)
        xw = xw.reshape(T, Bp, Hp)

        # Serial recurrence (only the h @ W_hh^T dot remains per step).
        x, hT = rnn_recurrence(xw, w_hh_t, hidden_p[l],
                               t_chunk=t_chunk, bt=bt)
        h_finals.append(hT)

    hidden_out = jnp.stack(h_finals, axis=0)[:, :B, :H]   # (L, B, H) f32

    # Layout fix once on the small bf16 (T, Bp, Hp) tensor, then the vocab FC
    # (N-major so the (Hp, V) weight is streamed from HBM only once).
    x_bm = jnp.transpose(x, (1, 0, 2)).reshape(Bp * T, Hp)
    fc_w_t = params["fc_w_t"]
    if fc_w_t.shape[0] != Hp:
        fc_w_t = jnp.pad(fc_w_t, ((0, Hp - fc_w_t.shape[0]), (0, 0)))
    logits = matmul_bias(x_bm, fc_w_t, params["fc_b"],
                         out_dtype=jnp.float32, n_major=True)
    logits = logits.reshape(Bp, T, V)[:B]                  # (B, T, V)
    return logits, hidden_out


# ---------------------------------------------------------------------------
# Deterministic parameter init (mirrors PyTorch module shapes; bf16 weights)
# ---------------------------------------------------------------------------
def init_params(key, vocab_size, emb_dim, hidden_dim, num_layers):
    keys = jax.random.split(key, 2 + 4 * num_layers + 2)
    ki = iter(keys)

    emb = jax.random.normal(next(ki), (vocab_size, emb_dim), jnp.float32) * 0.1
    emb = emb.at[3].set(0.0)  # padding_idx=3 -> zero row

    rnn_params = []
    for l in range(num_layers):
        in_dim = emb_dim if l == 0 else hidden_dim
        s = 1.0 / jnp.sqrt(hidden_dim)
        w_ih = jax.random.uniform(next(ki), (hidden_dim, in_dim), jnp.float32, -s, s)
        w_hh = jax.random.uniform(next(ki), (hidden_dim, hidden_dim), jnp.float32, -s, s)
        b_ih = jax.random.uniform(next(ki), (hidden_dim,), jnp.float32, -s, s)
        b_hh = jax.random.uniform(next(ki), (hidden_dim,), jnp.float32, -s, s)
        rnn_params.append({
            "w_ih_t": w_ih.T.astype(jnp.bfloat16),                     # (in_dim, H)
            "w_hh_t": w_hh.T.astype(jnp.bfloat16),                     # (H, H)
            "bias": (b_ih + b_hh).reshape(1, hidden_dim).astype(jnp.float32),
        })

    s = 1.0 / jnp.sqrt(hidden_dim)
    fc_w = jax.random.uniform(next(ki), (vocab_size, hidden_dim), jnp.float32, -s, s)
    fc_b = jax.random.uniform(next(ki), (vocab_size,), jnp.float32, -s, s)

    return {
        "embedding": emb.astype(jnp.bfloat16),
        "rnn": rnn_params,
        "fc_w_t": fc_w.T.astype(jnp.bfloat16),                         # (H, V)
        "fc_b": fc_b.reshape(1, vocab_size).astype(jnp.float32),       # (1, V)
    }


# ---------------------------------------------------------------------------
# Pure-JAX reference (mirrors the kernels' bf16 cast points) for a sanity check
# ---------------------------------------------------------------------------
def reference_forward(params, input_ids, hidden=None):
    bf16 = jnp.bfloat16
    B, T = input_ids.shape
    num_layers = len(params["rnn"])
    H = params["rnn"][0]["w_hh_t"].shape[0]
    if hidden is None:
        hidden = jnp.zeros((num_layers, B, H), jnp.float32)
    x = jnp.take(params["embedding"], input_ids, axis=0).astype(jnp.float32)
    h_finals = []
    for l in range(num_layers):
        p = params["rnn"][l]
        w_ih = p["w_ih_t"].astype(jnp.float32)
        w_hh = p["w_hh_t"].astype(jnp.float32)
        x_b = x.astype(bf16).astype(jnp.float32)        # mirror in-kernel cast
        xw = jnp.einsum("bte,eh->bth", x_b, w_ih) + p["bias"]
        h = hidden[l]
        outs = []
        for t in range(T):
            h = jnp.tanh(xw[:, t, :]
                         + h.astype(bf16).astype(jnp.float32) @ w_hh)
            outs.append(h)
        x = jnp.stack(outs, axis=1)
        h_finals.append(h)
    x_b = x.astype(bf16).astype(jnp.float32)
    logits = x_b @ params["fc_w_t"].astype(jnp.float32) + params["fc_b"]
    return logits, jnp.stack(h_finals, axis=0)


# ---------------------------------------------------------------------------
if __name__ == "__main__":
    VOCAB = 64
    EMB = 32
    HIDDEN = 32
    LAYERS = 2
    B, T = 2, 8

    key = jax.random.PRNGKey(0)
    pkey, dkey = jax.random.split(key)
    params = init_params(pkey, VOCAB, EMB, HIDDEN, LAYERS)
    input_ids = jax.random.randint(dkey, (B, T), 0, VOCAB, dtype=jnp.int32)

    logits, hidden = jax.block_until_ready(
        vanilla_rnn_forward(params, input_ids))

    ref_logits, ref_hidden = reference_forward(params, input_ids)
    assert logits.shape == (B, T, VOCAB)
    assert hidden.shape == (LAYERS, B, HIDDEN)
    assert jnp.allclose(logits, ref_logits, atol=5e-3, rtol=5e-3)
    assert jnp.allclose(hidden, ref_hidden, atol=5e-3, rtol=5e-3)

    print("KERNEL_OK")
</pallas_src>

<mosaic_0001>
module attributes {stable_mosaic.version = 11 : i64} {
  func.func @_matmul_bias_kernel(%arg0: i32, %arg1: i32, %arg2: memref<64x32xbf16, #tpu.memory_space<vmem>>, %arg3: memref<32x128xbf16, #tpu.memory_space<vmem>>, %arg4: memref<1x128xf32, #tpu.memory_space<vmem>>, %arg5: memref<64x128xf32, #tpu.memory_space<vmem>>) attributes {dimension_semantics = [#tpu.dimension_semantics<parallel>, #tpu.dimension_semantics<parallel>], iteration_bounds = array<i64: 1, 1>, scalar_prefetch = 0 : i64, scratch_operands = 0 : i64, tpu.core_type = #tpu.core_type<tc>, window_params = [{transform_indices = @transform_0, window_bounds = array<i64: 64, 32>}, {transform_indices = @transform_1, window_bounds = array<i64: 32, 128>}, {transform_indices = @transform_2, window_bounds = array<i64: 1, 128>}, {transform_indices = @transform_3, window_bounds = array<i64: 64, 128>}]} {
    %c0 = arith.constant 0 : index
    %c0_0 = arith.constant 0 : index
    %0 = vector.load %arg2[%c0, %c0_0] : memref<64x32xbf16, #tpu.memory_space<vmem>>, vector<64x32xbf16>
    %c0_1 = arith.constant 0 : index
    %c0_2 = arith.constant 0 : index
    %1 = vector.load %arg3[%c0_1, %c0_2] : memref<32x128xbf16, #tpu.memory_space<vmem>>, vector<32x128xbf16>
    %cst = arith.constant dense<0.000000e+00> : vector<64x128xf32>
    %2 = tpu.matmul %0, %1, %cst {dimension_numbers = #tpu.dot_dimension_numbers<[1], [0], [0], [1], [0, 0, 1, 1], [], []>} : vector<64x32xbf16>, vector<32x128xbf16>, vector<64x128xf32> -> vector<64x128xf32>
    %c0_3 = arith.constant 0 : index
    %c0_4 = arith.constant 0 : index
    %3 = vector.load %arg4[%c0_3, %c0_4] : memref<1x128xf32, #tpu.memory_space<vmem>>, vector<1x128xf32>
    %4 = vector.broadcast %3 : vector<1x128xf32> to vector<64x128xf32>
    %5 = arith.addf %2, %4 : vector<64x128xf32>
    %c0_5 = arith.constant 0 : index
    %c0_6 = arith.constant 0 : index
    %6 = vector.load %arg5[%c0_5, %c0_6] : memref<64x128xf32, #tpu.memory_space<vmem>>, vector<64x128xf32>
    tpu.vector_store %arg5[%c0_5, %c0_6], %5 {strides = array<i32>} : memref<64x128xf32, #tpu.memory_space<vmem>>, vector<64x128xf32>,
    return
  }
  func.func @transform_0(%arg0: i32, %arg1: i32) -> (i32, i32) {
    %c0_i32 = arith.constant 0 : i32
    %c0_i32_0 = arith.constant 0 : i32
    return %arg0, %c0_i32 : i32, i32
  }
  func.func @transform_1(%arg0: i32, %arg1: i32) -> (i32, i32) {
    %c0_i32 = arith.constant 0 : i32
    %c0_i32_0 = arith.constant 0 : i32
    return %c0_i32, %arg1 : i32, i32
  }
  func.func @transform_2(%arg0: i32, %arg1: i32) -> (i32, i32) {
    %c0_i32 = arith.constant 0 : i32
    %c0_i32_0 = arith.constant 0 : i32
    return %c0_i32, %arg1 : i32, i32
  }
  func.func @transform_3(%arg0: i32, %arg1: i32) -> (i32, i32) {
    %c0_i32 = arith.constant 0 : i32
    return %arg0, %arg1 : i32, i32
  }
}

</mosaic_0001>

<llo_original>
// kernel: tpu_custom_call.1
$region0: #{tpu_custom_call.1}
  #allocation0 [shape = 'u32[]', space=smem, size = 0x4, offset = 0x4, fixed_abs, tag = 'smem constant byte address 0x4 - core index']
  #allocation1 [shape = 'u32[144,128]{1,0:T(1,128)}', space=vmem, size = 0x12000, scoped, tag = 'internal scratch']
  %s0 = inlined_call_operand.vmem [shape: bf16[64,32], index: 0, kind: input, shape index: {}]
  %s1 = inlined_call_operand.vmem [shape: bf16[32,128], index: 1, kind: input, shape index: {}]
  %s2 = inlined_call_operand.vmem [shape: f32[1,128], index: 2, kind: input, shape index: {}]
  %s3 = inlined_call_operand.hbm [shape: f32[64,128], index: 3, kind: output, shape index: {}]
  %s4 = sld [smem:[#allocation0]]
  $region22: #{tpu_custom_call.1} parent=0
    _
  %s6 = ssub.s32 1, %s4
  %s7 = scalar_select 0, %s6, %s4
  $region1: #{tpu_custom_call.1} parent=0
    #allocation2 [shape = 'u8[32768]{0}', space=vmem, size = 0x8000, scoped, tag = 'output window, operand 0, single buffered']
    #allocation3 [shape = 's32[1]{0}', space=sflag, size = 0x4, scoped, tag = 'scoped memory for tpu_custom_call.1']
    %8 = vsyncpa [#allocation3], 0
    // Predicated region
    $region2: #{tpu_custom_call.1} parent=1 // pred_check
      _
    $region3: #{tpu_custom_call.1} parent=1 // pred_check_branch
      %10 = sbr.rel (0) target = $region5
    $region4: #{tpu_custom_call.1} parent=1 // pred_region
      _
    $region5: #{tpu_custom_call.1} parent=1 // pred_fallthru
      _
    // Predicated region
    $region6: #{tpu_custom_call.1} parent=1 // pred_check
      _
    $region7: #{tpu_custom_call.1} parent=1 // pred_check_branch
      %12 = sbr.rel (0) target = $region9
    $region8: #{tpu_custom_call.1} parent=1 // pred_region
      _
    $region9: #{tpu_custom_call.1} parent=1 // pred_fallthru
      _
    // Predicated region
    $region10: #{tpu_custom_call.1} parent=1 // pred_check
      _
    $region11: #{tpu_custom_call.1} parent=1 // pred_check_branch
      %14 = sbr.rel (0) target = $region13
    $region12: #{tpu_custom_call.1} parent=1 // pred_region
      _
    $region13: #{tpu_custom_call.1} parent=1 // pred_fallthru
      _
    %v16 = vld [vmem:[%s0] sm:$0xf]
    %v17 = vld [vmem:[%s0 + $0x4] sm:$0xf]
    %v18 = vld [vmem:[%s0 + $0x8] sm:$0xf]
    %v19 = vld [vmem:[%s0 + $0xc] sm:$0xf]
    %v20 = vld [vmem:[%s0 + $0x10] sm:$0xf]
    %v21 = vld [vmem:[%s0 + $0x14] sm:$0xf]
    %v22 = vld [vmem:[%s0 + $0x18] sm:$0xf]
    %v23 = vld [vmem:[%s0 + $0x1c] sm:$0xf]
    %v24 = vld [vmem:[%s1] sm:$0xf]
    %v25 = vld [vmem:[%s1 + $0x4] sm:$0xf]
    %v26 = vld [vmem:[%s1 + $0x8] sm:$0xf]
    %v27 = vld [vmem:[%s1 + $0xc] sm:$0xf]
    %v28 = vld [vmem:[%s2] sm:$0x1]
    %v30 = vlaneseq
    %v31 = vshrl.u32 %v30, 7
    %v32 = vsub.s32 0, %v31
    %v33 = vrot.slane %v28, %v32
    %v43 = vunpack.c.l.b16 %v16
    %v44 = vunpack.c.l.b16 %v17
    %v45 = vunpack.c.l.b16 %v18
    %v46 = vunpack.c.l.b16 %v19
    %v47 = vunpack.c.l.b16 %v20
    %v48 = vunpack.c.l.b16 %v21
    %v49 = vunpack.c.l.b16 %v22
    %v50 = vunpack.c.l.b16 %v23
    %v51 = vpack.c.b16 %v44, %v43
    %v52 = vpack.c.b16 %v46, %v45
    %v53 = vpack.c.b16 %v48, %v47
    %v54 = vpack.c.b16 %v50, %v49
    %v59 = vunpack.c.l.b16 %v24
    %v60 = vunpack.c.l.b16 %v25
    %v61 = vunpack.c.l.b16 %v26
    %v62 = vunpack.c.l.b16 %v27
    %v63 = vpack.c.b16 %v60, %v59
    %v64 = vpack.c.b16 %v62, %v61
    %vm67 = vcmask 261120
    %v69 = vsel %vm67, %v51, 0
    %v72 = vsel %vm67, %v52, 0
    %v75 = vsel %vm67, %v53, 0
    %v78 = vsel %vm67, %v54, 0
    %80 = vmatprep.subr.bf16.mxu0 0
    %81 = vmatpush1.bf16.msra.mxu0 %v63
    %82 = vmatprep.subr.bf16.mxu0 0
    %83 = vmatpush1.bf16.msra.mxu0 %v64
    %84 = vmatprep.subr.bf16.mxu0 0
    %85 = vmatpush1.bf16.msra.mxu0 0
    %86 = vmatprep.subr.bf16.mxu0 0
    %87 = vmatpush1.bf16.msra.mxu0 0
    %88 = vmatprep.subr.bf16.mxu0 0
    %89 = vmatpush1.bf16.msra.mxu0 0
    %90 = vmatprep.subr.bf16.mxu0 0
    %91 = vmatpush1.bf16.msra.mxu0 0
    %92 = vmatprep.subr.bf16.mxu0 0
    %93 = vmatpush1.bf16.msra.mxu0 0
    %94 = vmatprep.subr.bf16.mxu0 0
    %95 = vmatpush1.bf16.msra.mxu0 0
    %96 = vmatprep.subr.bf16.mxu0 0
    %97 = vmatpush1.bf16.msra.mxu0 0
    %98 = vmatprep.subr.bf16.mxu0 0
    %99 = vmatpush1.bf16.msra.mxu0 0
    %100 = vmatprep.subr.bf16.mxu0 0
    %101 = vmatpush1.bf16.msra.mxu0 0
    %102 = vmatprep.subr.bf16.mxu0 0
    %103 = vmatpush1.bf16.msra.mxu0 0
    %104 = vmatprep.subr.bf16.mxu0 0
    %105 = vmatpush1.bf16.msra.mxu0 0
    %106 = vmatprep.subr.bf16.mxu0 0
    %107 = vmatpush1.bf16.msra.mxu0 0
    %108 = vmatprep.subr.bf16.mxu0 0
    %109 = vmatpush1.bf16.msra.mxu0 0
    %110 = vmatprep.subr.bf16.mxu0 0
    %111 = vmatpush1.bf16.msra.mxu0 0
    %112 = vmatprep.mubr.bf16.mxu0 0
    %113 = vmatmul.mubr.bf16.gmra.mrb[0].mxu0 %v69
    %v114 = vpop.f32.mrb[0].mxu0
    %v115 = vadd.f32 %v33, %v114
    %v116 = vpop.f32.mrb[0].mxu0
    %v117 = vpop.f32.mrb[0].mxu0
    %v118 = vadd.f32 %v33, %v117
    %v119 = vpop.f32.mrb[0].mxu0
    %120 = vmatprep.mubr.bf16.mxu0 0
    %121 = vmatmul.mubr.bf16.gmra.mrb[0].mxu0 %v72
    %v122 = vpop.f32.mrb[0].mxu0
    %v123 = vadd.f32 %v33, %v122
    %v124 = vpop.f32.mrb[0].mxu0
    %v125 = vpop.f32.mrb[0].mxu0
    %v126 = vadd.f32 %v33, %v125
    %v127 = vpop.f32.mrb[0].mxu0
    %128 = vmatprep.mubr.bf16.mxu0 0
    %129 = vmatmul.mubr.bf16.gmra.mrb[0].mxu0 %v75
    %v130 = vpop.f32.mrb[0].mxu0
    %v131 = vadd.f32 %v33, %v130
    %v132 = vpop.f32.mrb[0].mxu0
    %v133 = vpop.f32.mrb[0].mxu0
    %v134 = vadd.f32 %v33, %v133
    %v135 = vpop.f32.mrb[0].mxu0
    %136 = vmatprep.mubr.bf16.mxu0 0
    %137 = vmatmul.mubr.bf16.gmra.mrb[0].mxu0 %v78
    %v138 = vpop.f32.mrb[0].mxu0
    %v139 = vadd.f32 %v33, %v138
    %v140 = vpop.f32.mrb[0].mxu0
    %v141 = vpop.f32.mrb[0].mxu0
    %v142 = vadd.f32 %v33, %v141
    %v143 = vpop.f32.mrb[0].mxu0
    %144 = vdwg.mxu0
    %145 = vst [vmem:[#allocation2] sm:$0xff] %v115
    %146 = vst [vmem:[#allocation2 + $0x8] sm:$0xff] %v118
    %147 = vst [vmem:[#allocation2 + $0x10] sm:$0xff] %v123
    %148 = vst [vmem:[#allocation2 + $0x18] sm:$0xff] %v126
    %149 = vst [vmem:[#allocation2 + $0x20] sm:$0xff] %v131
    %150 = vst [vmem:[#allocation2 + $0x28] sm:$0xff] %v134
    %151 = vst [vmem:[#allocation2 + $0x30] sm:$0xff] %v139
    %152 = vst [vmem:[#allocation2 + $0x38] sm:$0xff] %v142
    // Predicated region
    $region14: #{tpu_custom_call.1} parent=1 // pred_check
      _
    $region15: #{tpu_custom_call.1} parent=1 // pred_check_branch
      %154 = sbr.rel (0) target = $region17
    $region16: #{tpu_custom_call.1} parent=1 // pred_region
      %s156 = ssub.s32 1024, 1024
      %157 = vsyncadd [#allocation3], %s156
      %s158 = sshll.u32 [#allocation2], 4
      %s159 = int_to_ptr.vmem [resolvable:$true] %s158
      %164 = dma.vmem_to_hbm [thread:$0]  %s159, 1024, %s3, [#allocation3], 128, 128, 8
    $region17: #{tpu_custom_call.1} parent=1 // pred_fallthru
      _
    // Predicated region
    $region18: #{tpu_custom_call.1} parent=1 // pred_check
      _
    $region19: #{tpu_custom_call.1} parent=1 // pred_check_branch
      %166 = sbr.rel (0) target = $region21
    $region20: #{tpu_custom_call.1} parent=1 // pred_region
      %167 = dma.done [#allocation3], 1024
    $region21: #{tpu_custom_call.1} parent=1 // pred_fallthru
      _
    %168 = vsyncpa [#allocation3], 1

</llo_original>
